<compile_context>
chip_gen: v5e
topology: v5e:2x2
jax: 0.10.0
libtpu: 0.0.40
codegen_flags: <defaults>
</compile_context>

<pallas_src>
from typing import NamedTuple

import jax
import jax.numpy as jnp
from jax.experimental import pallas as pl
from jax.experimental.pallas import tpu as pltpu


def _cdiv(a, b):
    return (a + b - 1) // b


def _round_up(x, m):
    return _cdiv(x, m) * m


# ---------------------------------------------------------------------------
# Kernel
# ---------------------------------------------------------------------------
def hidden_layer_kernel(x_ref, w_ref, b_ref, o_ref):
    # x_ref: (tile_b, tile_k) bf16, w_ref: (tile_k, tile_n) bf16,
    # b_ref: (1, tile_n) f32, o_ref: (tile_b, tile_n) f32, resident across k.
    k = pl.program_id(2)

    @pl.when(k == 0)
    def _():
        o_ref[...] = jnp.zeros_like(o_ref)

    o_ref[...] += jnp.dot(
        x_ref[...], w_ref[...], preferred_element_type=jnp.float32
    )

    @pl.when(k == pl.num_programs(2) - 1)
    def _():
        h = o_ref[...] + b_ref[...]            # bias broadcast over batch rows
        # sigmoid(h) == 0.5 * (tanh(h / 2) + 1): one EUP op, exact accuracy.
        o_ref[...] = 0.5 * (jnp.tanh(0.5 * h) + 1.0)


# ---------------------------------------------------------------------------
# Tile selection (per TPU generation)
# ---------------------------------------------------------------------------
_MAX_TILE_B = 256  # upper bound used for VMEM budgeting


def _vmem_capacity_bytes():
    try:
        info = pltpu.get_tpu_info()
        cap = getattr(info, "vmem_capacity_bytes", None)
        if cap:
            return int(cap)
    except Exception:
        pass
    return 64 << 20  # conservative (v7x-sized) fallback


def _choose_kn_tiles(n_in, n_out, vmem_cap):
    # Budget for the double-buffered pipeline working set (x, w, bias, out).
    budget = min(vmem_cap // 2, 28 << 20)
    kp_full = _round_up(n_in, 128)
    np_full = _round_up(n_out, 128)
    cap_k, cap_n = 2048, 1024

    def working_set(tk, tn):
        # 2x double-buffered: bf16 x/w tiles, f32 bias + f32 output block.
        return 2 * (_MAX_TILE_B * tk * 2 + tk * tn * 2 + tn * 4
                    + _MAX_TILE_B * tn * 4)

    while True:
        tile_k = min(kp_full, cap_k)
        tile_n = min(np_full, cap_n)
        if working_set(tile_k, tile_n) <= budget:
            break
        if cap_k > 512:
            cap_k //= 2
        elif cap_n > 256:
            cap_n //= 2
        else:
            break

    # Guarantee >=2 tiles along the "parallel" j (n_out) axis when possible so
    # v7x's second TensorCore gets work even when the batch fits in one tile.
    if np_full // tile_n < 2 and tile_n >= 256:
        tile_n = _round_up(tile_n // 2, 128)
    return tile_k, tile_n


# ---------------------------------------------------------------------------
# Parameter prep (one-time) + forward pass
# ---------------------------------------------------------------------------
class HiddenLayerParams(NamedTuple):
    w_padded: jax.Array   # (Kp, Np) bf16 -- transposed, padded, cast once
    b_padded: jax.Array   # (1, Np)  f32
    n_in: int
    n_out: int
    tile_k: int
    tile_n: int


def prepare_hidden_layer(weight, bias, *, tile_k=None, tile_n=None):
    """One-time parameter setup. weight: (n_out, n_in) f32 (torch layout), bias: (n_out,)."""
    n_out, n_in = weight.shape
    if tile_k is None or tile_n is None:
        auto_k, auto_n = _choose_kn_tiles(n_in, n_out, _vmem_capacity_bytes())
        tile_k = auto_k if tile_k is None else tile_k
        tile_n = auto_n if tile_n is None else tile_n
    Kp = _round_up(n_in, tile_k)
    Np = _round_up(n_out, tile_n)
    w_t = weight.T.astype(jnp.bfloat16)                       # (n_in, n_out)
    w_p = jnp.pad(w_t, ((0, Kp - n_in), (0, Np - n_out)))
    b_p = jnp.pad(bias.astype(jnp.float32), (0, Np - n_out)).reshape(1, Np)
    return HiddenLayerParams(w_p, b_p, int(n_in), int(n_out),
                             int(tile_k), int(tile_n))


def hidden_layer_apply(params, x, *, tile_b=None):
    """Forward pass: sigmoid(x @ W.T + b). x: (B, n_in) f32 -> (B, n_out) f32."""
    B, n_in = x.shape
    assert n_in == params.n_in
    tile_k, tile_n = params.tile_k, params.tile_n
    Kp, Np = params.w_padded.shape

    if tile_b is None:
        # Balanced batch tiles: avoid e.g. B=300 -> Bp=512 (40% wasted rows).
        tile_b = _round_up(_cdiv(B, _cdiv(B, _MAX_TILE_B)), 8)
    Bp = _round_up(B, tile_b)

    x_bf16 = x.astype(jnp.bfloat16)
    if Bp != B or Kp != n_in:
        x_bf16 = jnp.pad(x_bf16, ((0, Bp - B), (0, Kp - n_in)))

    grid = (Bp // tile_b, Np // tile_n, Kp // tile_k)

    cost = pl.CostEstimate(
        flops=2 * Bp * Kp * Np,
        transcendentals=Bp * Np,
        bytes_accessed=2 * (Bp * Kp + Kp * Np) + 4 * (Bp * Np + Np),
    )

    vmem_cap = _vmem_capacity_bytes()
    vmem_limit = int(min(vmem_cap * 3 // 4, 96 << 20))

    out_p = pl.pallas_call(
        hidden_layer_kernel,
        out_shape=jax.ShapeDtypeStruct((Bp, Np), jnp.float32),
        grid_spec=pltpu.PrefetchScalarGridSpec(
            num_scalar_prefetch=0,
            grid=grid,
            in_specs=[
                pl.BlockSpec((tile_b, tile_k), lambda i, j, k: (i, k)),
                pl.BlockSpec((tile_k, tile_n), lambda i, j, k: (k, j)),
                pl.BlockSpec((1, tile_n), lambda i, j, k: (0, j)),
            ],
            out_specs=pl.BlockSpec((tile_b, tile_n), lambda i, j, k: (i, j)),
        ),
        compiler_params=pltpu.CompilerParams(
            dimension_semantics=("parallel", "parallel", "arbitrary"),
            vmem_limit_bytes=vmem_limit,
        ),
        cost_estimate=cost,
    )(x_bf16, params.w_padded, params.b_padded)

    if Bp != B or Np != params.n_out:
        out_p = out_p[:B, :params.n_out]
    return out_p


def hidden_layer(x, weight, bias):
    """Convenience one-shot wrapper (prep + apply). Prefer prepare+apply in a loop."""
    return hidden_layer_apply(prepare_hidden_layer(weight, bias), x)


def hidden_layer_ref(x, weight, bias):
    return jax.nn.sigmoid(x @ weight.T + bias[None, :])


# ---------------------------------------------------------------------------
# Demo / self-test
# ---------------------------------------------------------------------------
if __name__ == "__main__":
    key = jax.random.PRNGKey(0)
    k1, k2 = jax.random.split(key)

    def make_inputs(key, B, n_in, n_out):
        kx, kw, kb = jax.random.split(key, 3)
        x = jax.random.normal(kx, (B, n_in), dtype=jnp.float32)
        # torch.nn.Linear init: uniform(-1/sqrt(n_in), 1/sqrt(n_in)), weight (n_out, n_in)
        bound = 1.0 / (n_in ** 0.5)
        w = jax.random.uniform(kw, (n_out, n_in), minval=-bound, maxval=bound,
                               dtype=jnp.float32)
        b = jax.random.uniform(kb, (n_out,), minval=-bound, maxval=bound,
                               dtype=jnp.float32)
        return x, w, b

    # Small case consistent with the module (single tile after padding).
    B, n_in, n_out = 8, 32, 32
    x, w, b = make_inputs(k1, B, n_in, n_out)
    params = prepare_hidden_layer(w, b)        # one-time pad/transpose/cast
    out = jax.block_until_ready(hidden_layer_apply(params, x))
    ref = hidden_layer_ref(x, w, b)
    assert out.shape == (B, n_out)
    # bf16 MXU operands -> modest tolerance; sigmoid compresses the error.
    assert jnp.allclose(out, ref, atol=1e-2, rtol=1e-2), \
        float(jnp.max(jnp.abs(out - ref)))

    # Ragged, multi-tile case: exercises the (i, j, k) grid, the resident
    # output accumulator across k, and the pad-and-slice path.
    B2, n_in2, n_out2 = 24, 200, 300
    x2, w2, b2 = make_inputs(k2, B2, n_in2, n_out2)
    params2 = prepare_hidden_layer(w2, b2, tile_k=128, tile_n=128)
    out2 = jax.block_until_ready(hidden_layer_apply(params2, x2, tile_b=8))
    ref2 = hidden_layer_ref(x2, w2, b2)
    assert out2.shape == (B2, n_out2)
    assert jnp.allclose(out2, ref2, atol=1e-2, rtol=1e-2), \
        float(jnp.max(jnp.abs(out2 - ref2)))

    print("KERNEL_OK")
</pallas_src>

<mosaic_0001>
module attributes {stable_mosaic.version = 11 : i64} {
  func.func @hidden_layer_kernel(%arg0: i32, %arg1: i32, %arg2: i32, %arg3: memref<8x128xbf16, #tpu.memory_space<vmem>>, %arg4: memref<128x128xbf16, #tpu.memory_space<vmem>>, %arg5: memref<1x128xf32, #tpu.memory_space<vmem>>, %arg6: memref<8x128xf32, #tpu.memory_space<vmem>>) attributes {dimension_semantics = [#tpu.dimension_semantics<parallel>, #tpu.dimension_semantics<parallel>, #tpu.dimension_semantics<arbitrary>], iteration_bounds = array<i64: 1, 1, 1>, scalar_prefetch = 0 : i64, scratch_operands = 0 : i64, tpu.core_type = #tpu.core_type<tc>, window_params = [{transform_indices = @transform_0, window_bounds = array<i64: 8, 128>}, {transform_indices = @transform_1, window_bounds = array<i64: 128, 128>}, {transform_indices = @transform_2, window_bounds = array<i64: 1, 128>}, {transform_indices = @transform_3, window_bounds = array<i64: 8, 128>}]} {
    %c0_i32 = arith.constant 0 : i32
    %0 = arith.cmpi eq, %arg2, %c0_i32 : i32
    %1 = arith.extui %0 : i1 to i32
    %c0_i32_0 = arith.constant 0 : i32
    %2 = arith.cmpi ne, %1, %c0_i32_0 : i32
    scf.if %2 {
      %cst_10 = arith.constant 0.000000e+00 : f32
      %12 = vector.broadcast %cst_10 : f32 to vector<8x128xf32>
      %c0_11 = arith.constant 0 : index
      %c0_12 = arith.constant 0 : index
      %13 = vector.load %arg6[%c0_11, %c0_12] : memref<8x128xf32, #tpu.memory_space<vmem>>, vector<8x128xf32>
      tpu.vector_store %arg6[%c0_11, %c0_12], %12 {strides = array<i32>} : memref<8x128xf32, #tpu.memory_space<vmem>>, vector<8x128xf32>,
    } else {
    }
    %c0 = arith.constant 0 : index
    %c0_1 = arith.constant 0 : index
    %3 = vector.load %arg6[%c0, %c0_1] : memref<8x128xf32, #tpu.memory_space<vmem>>, vector<8x128xf32>
    %c0_2 = arith.constant 0 : index
    %c0_3 = arith.constant 0 : index
    %4 = vector.load %arg3[%c0_2, %c0_3] : memref<8x128xbf16, #tpu.memory_space<vmem>>, vector<8x128xbf16>
    %c0_4 = arith.constant 0 : index
    %c0_5 = arith.constant 0 : index
    %5 = vector.load %arg4[%c0_4, %c0_5] : memref<128x128xbf16, #tpu.memory_space<vmem>>, vector<128x128xbf16>
    %cst = arith.constant dense<0.000000e+00> : vector<8x128xf32>
    %6 = tpu.matmul %4, %5, %cst {dimension_numbers = #tpu.dot_dimension_numbers<[1], [0], [0], [1], [0, 0, 1, 1], [], []>} : vector<8x128xbf16>, vector<128x128xbf16>, vector<8x128xf32> -> vector<8x128xf32>
    %7 = arith.addf %3, %6 : vector<8x128xf32>
    %c0_6 = arith.constant 0 : index
    %c0_7 = arith.constant 0 : index
    %8 = vector.load %arg6[%c0_6, %c0_7] : memref<8x128xf32, #tpu.memory_space<vmem>>, vector<8x128xf32>
    tpu.vector_store %arg6[%c0_6, %c0_7], %7 {strides = array<i32>} : memref<8x128xf32, #tpu.memory_space<vmem>>, vector<8x128xf32>,
    %c0_i32_8 = arith.constant 0 : i32
    %9 = arith.cmpi eq, %arg2, %c0_i32_8 : i32
    %10 = arith.extui %9 : i1 to i32
    %c0_i32_9 = arith.constant 0 : i32
    %11 = arith.cmpi ne, %10, %c0_i32_9 : i32
    scf.if %11 {
      %c0_10 = arith.constant 0 : index
      %c0_11 = arith.constant 0 : index
      %12 = vector.load %arg6[%c0_10, %c0_11] : memref<8x128xf32, #tpu.memory_space<vmem>>, vector<8x128xf32>
      %c0_12 = arith.constant 0 : index
      %c0_13 = arith.constant 0 : index
      %13 = vector.load %arg5[%c0_12, %c0_13] : memref<1x128xf32, #tpu.memory_space<vmem>>, vector<1x128xf32>
      %14 = vector.broadcast %13 : vector<1x128xf32> to vector<8x128xf32>
      %15 = arith.addf %12, %14 : vector<8x128xf32>
      %cst_14 = arith.constant 5.000000e-01 : f32
      %16 = vector.broadcast %cst_14 : f32 to vector<8x128xf32>
      %17 = arith.mulf %16, %15 : vector<8x128xf32>
      %18 = math.tanh %17 : vector<8x128xf32>
      %cst_15 = arith.constant 1.000000e+00 : f32
      %19 = vector.broadcast %cst_15 : f32 to vector<8x128xf32>
      %20 = arith.addf %18, %19 : vector<8x128xf32>
      %cst_16 = arith.constant 5.000000e-01 : f32
      %21 = vector.broadcast %cst_16 : f32 to vector<8x128xf32>
      %22 = arith.mulf %21, %20 : vector<8x128xf32>
      %c0_17 = arith.constant 0 : index
      %c0_18 = arith.constant 0 : index
      %23 = vector.load %arg6[%c0_17, %c0_18] : memref<8x128xf32, #tpu.memory_space<vmem>>, vector<8x128xf32>
      tpu.vector_store %arg6[%c0_17, %c0_18], %22 {strides = array<i32>} : memref<8x128xf32, #tpu.memory_space<vmem>>, vector<8x128xf32>,
    } else {
    }
    return
  }
  func.func @transform_0(%arg0: i32, %arg1: i32, %arg2: i32) -> (i32, i32) {
    %c0_i32 = arith.constant 0 : i32
    return %arg0, %arg2 : i32, i32
  }
  func.func @transform_1(%arg0: i32, %arg1: i32, %arg2: i32) -> (i32, i32) {
    %c0_i32 = arith.constant 0 : i32
    return %arg2, %arg1 : i32, i32
  }
  func.func @transform_2(%arg0: i32, %arg1: i32, %arg2: i32) -> (i32, i32) {
    %c0_i32 = arith.constant 0 : i32
    %c0_i32_0 = arith.constant 0 : i32
    return %c0_i32, %arg1 : i32, i32
  }
  func.func @transform_3(%arg0: i32, %arg1: i32, %arg2: i32) -> (i32, i32) {
    %c0_i32 = arith.constant 0 : i32
    return %arg0, %arg1 : i32, i32
  }
}

</mosaic_0001>

<llo_original>
// kernel: tpu_custom_call.1
$region0: #{tpu_custom_call.1}
  #allocation0 [shape = 'u32[]', space=smem, size = 0x4, offset = 0x4, fixed_abs, tag = 'smem constant byte address 0x4 - core index']
  #allocation1 [shape = 'u32[72,128]{1,0:T(1,128)}', space=vmem, size = 0x9000, scoped, tag = 'internal scratch']
  %s0 = inlined_call_operand.hbm [shape: bf16[8,128], index: 0, kind: input, shape index: {}]
  %s1 = inlined_call_operand.hbm [shape: bf16[128,128], index: 1, kind: input, shape index: {}]
  %s2 = inlined_call_operand.vmem [shape: f32[1,128], index: 2, kind: input, shape index: {}]
  %s3 = inlined_call_operand.hbm [shape: f32[8,128], index: 3, kind: output, shape index: {}]
  %s4 = sld [smem:[#allocation0]]
  $region38: #{tpu_custom_call.1} parent=0
    _
  %s6 = ssub.s32 1, %s4
  %s7 = scalar_select 0, %s6, %s4
  $region1: #{tpu_custom_call.1} parent=0
    #allocation2 [shape = 'u8[2048]{0}', space=vmem, size = 0x800, scoped, tag = 'input window, operand 0, single buffered']
    #allocation3 [shape = 's32[1]{0}', space=sflag, size = 0x4, scoped, tag = 'scoped memory for tpu_custom_call.1']
    #allocation4 [shape = 's32[1]{0}', space=sflag, size = 0x4, scoped, tag = 'scoped memory for tpu_custom_call.1']
    #allocation5 [shape = 'u8[32768]{0}', space=vmem, size = 0x8000, scoped, tag = 'input window, operand 1, single buffered']
    #allocation6 [shape = 's32[1]{0}', space=sflag, size = 0x4, scoped, tag = 'scoped memory for tpu_custom_call.1']
    #allocation7 [shape = 'u8[4096]{0}', space=vmem, size = 0x1000, scoped, tag = 'output window, operand 0, single buffered']
    %8 = vsyncpa [#allocation3], 0
    %9 = vsyncpa [#allocation6], 0
    %10 = vsyncpa [#allocation4], 0
    // Predicated region
    $region2: #{tpu_custom_call.1} parent=1 // pred_check
      _
    $region3: #{tpu_custom_call.1} parent=1 // pred_check_branch
      %12 = sbr.rel (0) target = $region5
    $region4: #{tpu_custom_call.1} parent=1 // pred_region
      %14 = vsyncadd [#allocation3], 0
      %s16 = sshll.u32 %s0, 4
      %s17 = int_to_ptr.hbm [resolvable:$true] %s16
      %s18 = sshll.u32 [#allocation2], 4
      %s19 = int_to_ptr.vmem [resolvable:$true] %s18
      %21 = dma.hbm_to_vmem [thread:$0]  %s17, 64, %s19, [#allocation3]
    $region5: #{tpu_custom_call.1} parent=1 // pred_fallthru
      _
    // Predicated region
    $region6: #{tpu_custom_call.1} parent=1 // pred_check
      _
    $region7: #{tpu_custom_call.1} parent=1 // pred_check_branch
      %23 = sbr.rel (0) target = $region9
    $region8: #{tpu_custom_call.1} parent=1 // pred_region
      %25 = vsyncadd [#allocation6], 0
      %s26 = sshll.u32 %s1, 4
      %s27 = int_to_ptr.hbm [resolvable:$true] %s26
      %s28 = sshll.u32 [#allocation5], 4
      %s29 = int_to_ptr.vmem [resolvable:$true] %s28
      %34 = dma.hbm_to_vmem [thread:$0]  %s27, 1024, %s29, [#allocation6], 64, 64, 4
    $region9: #{tpu_custom_call.1} parent=1 // pred_fallthru
      _
    // Predicated region
    $region10: #{tpu_custom_call.1} parent=1 // pred_check
      _
    $region11: #{tpu_custom_call.1} parent=1 // pred_check_branch
      %36 = sbr.rel (0) target = $region13
    $region12: #{tpu_custom_call.1} parent=1 // pred_region
      _
    $region13: #{tpu_custom_call.1} parent=1 // pred_fallthru
      _
    // Predicated region
    $region14: #{tpu_custom_call.1} parent=1 // pred_check
      _
    $region15: #{tpu_custom_call.1} parent=1 // pred_check_branch
      %38 = sbr.rel (0) target = $region17
    $region16: #{tpu_custom_call.1} parent=1 // pred_region
      %40 = dma.done [#allocation3], 64
    $region17: #{tpu_custom_call.1} parent=1 // pred_fallthru
      _
    // Predicated region
    $region18: #{tpu_custom_call.1} parent=1 // pred_check
      _
    $region19: #{tpu_custom_call.1} parent=1 // pred_check_branch
      %42 = sbr.rel (0) target = $region21
    $region20: #{tpu_custom_call.1} parent=1 // pred_region
      %44 = dma.done [#allocation6], 1024
    $region21: #{tpu_custom_call.1} parent=1 // pred_fallthru
      _
    %p45 = scmp.eq.s32.totalorder 0, 0
    // Predicated region
    $region22: #{tpu_custom_call.1} parent=1 // pred_check
      %p46 = pneg %p45
    $region23: #{tpu_custom_call.1} parent=1 // pred_check_branch
      %48 = sbr.rel (%p46) target = $region25
    $region24: #{tpu_custom_call.1} parent=1 // pred_region
      %49 = vst [vmem:[#allocation7] sm:$0xff] 0.0
    $region25: #{tpu_custom_call.1} parent=1 // pred_fallthru
      _
    %v50 = vld [vmem:[#allocation7] sm:$0xff]
    %v51 = vld [vmem:[#allocation2] sm:$0xf]
    %v52 = vld [vmem:[#allocation5] sm:$0xf]
    %v53 = vld [vmem:[#allocation5 + $0x4] sm:$0xf]
    %v54 = vld [vmem:[#allocation5 + $0x8] sm:$0xf]
    %v55 = vld [vmem:[#allocation5 + $0xc] sm:$0xf]
    %v56 = vld [vmem:[#allocation5 + $0x10] sm:$0xf]
    %v57 = vld [vmem:[#allocation5 + $0x14] sm:$0xf]
    %v58 = vld [vmem:[#allocation5 + $0x18] sm:$0xf]
    %v59 = vld [vmem:[#allocation5 + $0x1c] sm:$0xf]
    %v60 = vld [vmem:[#allocation5 + $0x20] sm:$0xf]
    %v61 = vld [vmem:[#allocation5 + $0x24] sm:$0xf]
    %v62 = vld [vmem:[#allocation5 + $0x28] sm:$0xf]
    %v63 = vld [vmem:[#allocation5 + $0x2c] sm:$0xf]
    %v64 = vld [vmem:[#allocation5 + $0x30] sm:$0xf]
    %v65 = vld [vmem:[#allocation5 + $0x34] sm:$0xf]
    %v66 = vld [vmem:[#allocation5 + $0x38] sm:$0xf]
    %v67 = vld [vmem:[#allocation5 + $0x3c] sm:$0xf]
    %v84 = vunpack.c.l.b16 %v52
    %v85 = vunpack.c.l.b16 %v53
    %v86 = vunpack.c.l.b16 %v54
    %v87 = vunpack.c.l.b16 %v55
    %v88 = vunpack.c.l.b16 %v56
    %v89 = vunpack.c.l.b16 %v57
    %v90 = vunpack.c.l.b16 %v58
    %v91 = vunpack.c.l.b16 %v59
    %v92 = vunpack.c.l.b16 %v60
    %v93 = vunpack.c.l.b16 %v61
    %v94 = vunpack.c.l.b16 %v62
    %v95 = vunpack.c.l.b16 %v63
    %v96 = vunpack.c.l.b16 %v64
    %v97 = vunpack.c.l.b16 %v65
    %v98 = vunpack.c.l.b16 %v66
    %v99 = vunpack.c.l.b16 %v67
    %v100 = vpack.c.b16 %v85, %v84
    %v101 = vpack.c.b16 %v87, %v86
    %v102 = vpack.c.b16 %v89, %v88
    %v103 = vpack.c.b16 %v91, %v90
    %v104 = vpack.c.b16 %v93, %v92
    %v105 = vpack.c.b16 %v95, %v94
    %v106 = vpack.c.b16 %v97, %v96
    %v107 = vpack.c.b16 %v99, %v98
    %116 = vmatpush.bf16.msra.mxu0 %v107
    %117 = vmatpush.bf16.msra.mxu0 %v106
    %118 = vmatpush.bf16.msra.mxu0 %v105
    %119 = vmatpush.bf16.msra.mxu0 %v104
    %120 = vmatpush.bf16.msra.mxu0 %v103
    %121 = vmatpush.bf16.msra.mxu0 %v102
    %122 = vmatpush.bf16.msra.mxu0 %v101
    %123 = vmatpush.bf16.msra.mxu0 %v100
    %124 = vmatmul.bf16.gmra.mxu0 %v51
    %v125 = vpop.f32.mrf.mxu0
    %v126 = vadd.f32 0.0, %v125
    %v127 = vpop.f32.mrf.mxu0
    %128 = vdwg.mxu0
    %v129 = vadd.f32 %v50, %v126
    %130 = vst [vmem:[#allocation7] sm:$0xff] %v129
    // Predicated region
    $region26: #{tpu_custom_call.1} parent=1 // pred_check
      %p131 = pneg %p45
    $region27: #{tpu_custom_call.1} parent=1 // pred_check_branch
      %133 = sbr.rel (%p131) target = $region29
    $region28: #{tpu_custom_call.1} parent=1 // pred_region
      %v134 = vld [vmem:[#allocation7] sm:$0xff]
      %v135 = vld [vmem:[%s2] sm:$0x1]
      %v137 = vperm.slane %v135, 0
      %v139 = vadd.f32 %v134, %v137
      %v140 = vmul.f32 %v139, 0.5
      %v141 = vtanh.pop %v140
      %v142 = vadd.f32 %v141, 1.0
      %v143 = vmul.f32 %v142, 0.5
      %144 = vst [vmem:[#allocation7] sm:$0xff] %v143
    $region29: #{tpu_custom_call.1} parent=1 // pred_fallthru
      _
    // Predicated region
    $region30: #{tpu_custom_call.1} parent=1 // pred_check
      _
    $region31: #{tpu_custom_call.1} parent=1 // pred_check_branch
      %146 = sbr.rel (0) target = $region33
    $region32: #{tpu_custom_call.1} parent=1 // pred_region
      %148 = vsyncadd [#allocation4], 0
      %s150 = sshll.u32 [#allocation7], 4
      %s151 = int_to_ptr.vmem [resolvable:$true] %s150
      %s152 = sshll.u32 %s3, 4
      %s153 = int_to_ptr.hbm [resolvable:$true] %s152
      %155 = dma.vmem_to_hbm [thread:$0]  %s151, 128, %s153, [#allocation4]
    $region33: #{tpu_custom_call.1} parent=1 // pred_fallthru
      _
    // Predicated region
    $region34: #{tpu_custom_call.1} parent=1 // pred_check
      _
    $region35: #{tpu_custom_call.1} parent=1 // pred_check_branch
      %157 = sbr.rel (0) target = $region37
    $region36: #{tpu_custom_call.1} parent=1 // pred_region
      %159 = dma.done [#allocation4], 128
    $region37: #{tpu_custom_call.1} parent=1 // pred_fallthru
      _
    %160 = vsyncpa [#allocation3], 1
    %161 = vsyncpa [#allocation6], 1
    %162 = vsyncpa [#allocation4], 1

</llo_original>
